<compile_context>
chip_gen: v5e
topology: v5e:2x2
jax: 0.10.0
libtpu: 0.0.40
codegen_flags: <defaults>
</compile_context>

<pallas_src>
import functools

import jax
import jax.numpy as jnp
import numpy as np
from jax import lax
from jax.experimental import pallas as pl
from jax.experimental.pallas import tpu as pltpu


# ----------------------------------------------------------------------------
# Pallas kernel: full MHA + residual + LayerNorm, single invocation.
# ----------------------------------------------------------------------------
def _mha_kernel(xq_ref, xk_ref, xv_ref, wq_ref, wk_ref, wv_ref, wo_ref,
                out_ref, *, batch, n_heads, d_k, d_v):
    B = batch
    S = xq_ref.shape[1]
    D = xq_ref.shape[2]

    # Residual in f32; flatten leading dims so every projection is one
    # lane-dense (B*S, D) MXU matmul instead of B small ones.
    xq = xq_ref[...].reshape(B * S, D)
    xq16 = xq.astype(jnp.bfloat16)
    xk16 = xk_ref[...].reshape(B * S, D).astype(jnp.bfloat16)
    xv16 = xv_ref[...].reshape(B * S, D).astype(jnp.bfloat16)

    # Q/K/V projections over all B*S rows at once (bf16 operands, f32 acc).
    # 1/sqrt(d_k) is already folded into W_Q on the host -> no per-head score
    # scaling below.
    Q = jnp.dot(xq16, wq_ref[...], preferred_element_type=jnp.float32)  # (B*S, H*d_k)
    K = jnp.dot(xk16, wk_ref[...], preferred_element_type=jnp.float32)  # (B*S, H*d_k)
    V = jnp.dot(xv16, wv_ref[...], preferred_element_type=jnp.float32)  # (B*S, H*d_v)

    # One full-width bf16 cast each; the per-head slices below are cheap
    # static views of these.
    Q16 = Q.astype(jnp.bfloat16)
    K16 = K.astype(jnp.bfloat16)
    V16 = V.astype(jnp.bfloat16)

    # Per-(batch, head) scaled dot-product attention. Contexts stay in
    # registers and are concatenated (no narrow 32-lane VMEM stores, no
    # scratch round trip) so the output projection is one 128-deep
    # contraction.
    # TODO(synk): for production-scale S (esp. v7x, 64 MiB VMEM), tile the
    # sequence with an online-softmax (flash-style) inner loop instead of
    # holding full (S, S) scores, set vmem_limit_bytes explicitly, and shard
    # the batch axis across the 2 TensorCores (CORE_PARALLEL / core_map).
    batch_ctx = []
    for b in range(B):
        r0, r1 = b * S, (b + 1) * S
        head_ctx = []
        for h in range(n_heads):
            qh = Q16[r0:r1, h * d_k:(h + 1) * d_k]
            kh = K16[r0:r1, h * d_k:(h + 1) * d_k]
            vh = V16[r0:r1, h * d_v:(h + 1) * d_v]
            # scores = qh @ kh.T (scale pre-folded into W_Q)
            s = lax.dot_general(qh, kh, (((1,), (1,)), ((), ())),
                                preferred_element_type=jnp.float32)
            s = s - jnp.max(s, axis=-1, keepdims=True)       # stabilized softmax
            e = jnp.exp(s)
            denom = jnp.sum(e, axis=-1, keepdims=True)
            p = e * pl.reciprocal(denom, approx=True)         # EUP reciprocal
            head_ctx.append(jnp.dot(p.astype(jnp.bfloat16), vh,
                                    preferred_element_type=jnp.float32))
        batch_ctx.append(jnp.concatenate(head_ctx, axis=-1))  # (S, H*d_v)
    ctx = jnp.concatenate(batch_ctx, axis=0)                  # (B*S, H*d_v)

    # Single output projection + residual.
    out = jnp.dot(ctx.astype(jnp.bfloat16), wo_ref[...],
                  preferred_element_type=jnp.float32)          # (B*S, D)
    y = out + xq

    # Fresh nn.LayerNorm(d_model): weight=1, bias=0, eps=1e-5 (f32 math).
    mu = jnp.mean(y, axis=-1, keepdims=True)
    var = jnp.mean(jnp.square(y - mu), axis=-1, keepdims=True)
    y = (y - mu) * lax.rsqrt(var + 1e-5)                       # EUP rsqrt

    out_ref[...] = y.reshape(B, S, D).astype(out_ref.dtype)


# ----------------------------------------------------------------------------
# One-time host-side weight preparation (fold scale, cast to bf16).
# ----------------------------------------------------------------------------
def prepare_weights(params, d_k):
    """params: pre-transposed f32 linear weights (W_Q^T, W_K^T, W_V^T, W_fc^T)
    so that y = x @ W holds in the kernel. Folds 1/sqrt(d_k) into W_Q and
    casts to bf16 once (call this at init, not per forward)."""
    wq_t, wk_t, wv_t, wo_t = params
    scale = jnp.float32(1.0 / np.sqrt(d_k))
    return ((wq_t * scale).astype(jnp.bfloat16),
            wk_t.astype(jnp.bfloat16),
            wv_t.astype(jnp.bfloat16),
            wo_t.astype(jnp.bfloat16))


def multi_head_attention_pallas(input_Q, input_K, input_V, prepared_weights, *,
                                n_heads, d_k, d_v):
    """input_*: (B, S, d_model) f32. prepared_weights: output of prepare_weights."""
    B, S, D = input_Q.shape
    wq_b, wk_b, wv_b, wo_b = prepared_weights

    kernel = functools.partial(_mha_kernel, batch=B, n_heads=n_heads,
                               d_k=d_k, d_v=d_v)
    x_spec = pl.BlockSpec((B, S, D), lambda i: (0, 0, 0))
    w_spec = lambda shape: pl.BlockSpec(shape, lambda i: (0, 0))

    return pl.pallas_call(
        kernel,
        out_shape=jax.ShapeDtypeStruct((B, S, D), input_Q.dtype),
        grid_spec=pltpu.PrefetchScalarGridSpec(
            num_scalar_prefetch=0,
            grid=(1,),                               # whole problem, one step
            in_specs=[
                x_spec, x_spec, x_spec,              # input_Q, input_K, input_V
                w_spec((D, n_heads * d_k)),          # W_Q^T * 1/sqrt(d_k) (bf16)
                w_spec((D, n_heads * d_k)),          # W_K^T (bf16)
                w_spec((D, n_heads * d_v)),          # W_V^T (bf16)
                w_spec((n_heads * d_v, D)),          # W_fc^T (bf16)
            ],
            out_specs=pl.BlockSpec((B, S, D), lambda i: (0, 0, 0)),
        ),
        compiler_params=pltpu.CompilerParams(
            dimension_semantics=("arbitrary",)),
    )(input_Q, input_K, input_V, wq_b, wk_b, wv_b, wo_b)


# ----------------------------------------------------------------------------
# Pure-JAX f32 reference of MultiHeadAttention.forward (for verification).
# ----------------------------------------------------------------------------
def _mha_ref(input_Q, input_K, input_V, params, n_heads, d_k, d_v):
    wq_t, wk_t, wv_t, wo_t = params
    B, S, D = input_Q.shape
    Q = (input_Q @ wq_t).reshape(B, S, n_heads, d_k).transpose(0, 2, 1, 3)
    K = (input_K @ wk_t).reshape(B, S, n_heads, d_k).transpose(0, 2, 1, 3)
    V = (input_V @ wv_t).reshape(B, S, n_heads, d_v).transpose(0, 2, 1, 3)
    scores = jnp.einsum('bhqd,bhkd->bhqk', Q, K) / np.sqrt(d_k)
    attn = jax.nn.softmax(scores, axis=-1)
    ctx = jnp.einsum('bhqk,bhkd->bhqd', attn, V)
    ctx = ctx.transpose(0, 2, 1, 3).reshape(B, S, n_heads * d_v)
    out = ctx @ wo_t + input_Q
    mu = out.mean(-1, keepdims=True)
    var = ((out - mu) ** 2).mean(-1, keepdims=True)
    return (out - mu) / jnp.sqrt(var + 1e-5)


# ----------------------------------------------------------------------------
# Deterministic synthetic parameters (nn.Linear weights stored pre-transposed).
# ----------------------------------------------------------------------------
def init_params(key, n_heads, d_model, d_k, d_v):
    k1, k2, k3, k4 = jax.random.split(key, 4)
    s = 0.08
    return (
        s * jax.random.normal(k1, (d_model, n_heads * d_k), jnp.float32),  # W_Q^T
        s * jax.random.normal(k2, (d_model, n_heads * d_k), jnp.float32),  # W_K^T
        s * jax.random.normal(k3, (d_model, n_heads * d_v), jnp.float32),  # W_V^T
        s * jax.random.normal(k4, (n_heads * d_v, d_model), jnp.float32),  # W_fc^T
    )


if __name__ == "__main__":
    # Small, lane-dense shapes: d_model = n_heads * d_k = n_heads * d_v = 128.
    n_heads, d_model, d_k, d_v = 4, 128, 32, 32
    B, S = 2, 8

    key = jax.random.PRNGKey(0)
    kq, kkv, kp = jax.random.split(key, 3)
    input_Q = jax.random.normal(kq, (B, S, d_model), jnp.float32)
    input_KV = jax.random.normal(kkv, (B, S, d_model), jnp.float32)
    params = init_params(kp, n_heads, d_model, d_k, d_v)

    # One-time weight prep (scale fold + bf16 cast), outside the forward call.
    prepped = prepare_weights(params, d_k)

    out = multi_head_attention_pallas(input_Q, input_KV, input_KV, prepped,
                                      n_heads=n_heads, d_k=d_k, d_v=d_v)
    out = jax.block_until_ready(out)

    # Verify against the f32 reference (kernel uses bf16 MXU operands + approx
    # reciprocal, hence the moderate tolerance).
    ref = _mha_ref(input_Q, input_KV, input_KV, params, n_heads, d_k, d_v)
    np.testing.assert_allclose(np.asarray(out), np.asarray(ref),
                               rtol=3e-2, atol=3e-2)

    print("KERNEL_OK")
</pallas_src>

<mosaic_0001>
module attributes {stable_mosaic.version = 11 : i64} {
  func.func @_mha_kernel(%arg0: i32, %arg1: memref<2x8x128xf32, #tpu.memory_space<vmem>>, %arg2: memref<2x8x128xf32, #tpu.memory_space<vmem>>, %arg3: memref<2x8x128xf32, #tpu.memory_space<vmem>>, %arg4: memref<128x128xbf16, #tpu.memory_space<vmem>>, %arg5: memref<128x128xbf16, #tpu.memory_space<vmem>>, %arg6: memref<128x128xbf16, #tpu.memory_space<vmem>>, %arg7: memref<128x128xbf16, #tpu.memory_space<vmem>>, %arg8: memref<2x8x128xf32, #tpu.memory_space<vmem>>) attributes {dimension_semantics = [#tpu.dimension_semantics<arbitrary>], iteration_bounds = array<i64: 1>, scalar_prefetch = 0 : i64, scratch_operands = 0 : i64, tpu.core_type = #tpu.core_type<tc>, window_params = [{pipeline_mode = #tpu.pipeline_mode<synchronous>, transform_indices = @transform_0, window_bounds = array<i64: 2, 8, 128>}, {pipeline_mode = #tpu.pipeline_mode<synchronous>, transform_indices = @transform_1, window_bounds = array<i64: 2, 8, 128>}, {pipeline_mode = #tpu.pipeline_mode<synchronous>, transform_indices = @transform_2, window_bounds = array<i64: 2, 8, 128>}, {pipeline_mode = #tpu.pipeline_mode<synchronous>, transform_indices = @transform_3, window_bounds = array<i64: 128, 128>}, {pipeline_mode = #tpu.pipeline_mode<synchronous>, transform_indices = @transform_4, window_bounds = array<i64: 128, 128>}, {pipeline_mode = #tpu.pipeline_mode<synchronous>, transform_indices = @transform_5, window_bounds = array<i64: 128, 128>}, {pipeline_mode = #tpu.pipeline_mode<synchronous>, transform_indices = @transform_6, window_bounds = array<i64: 128, 128>}, {pipeline_mode = #tpu.pipeline_mode<synchronous>, transform_indices = @transform_7, window_bounds = array<i64: 2, 8, 128>}]} {
    %c0 = arith.constant 0 : index
    %c0_0 = arith.constant 0 : index
    %c0_1 = arith.constant 0 : index
    %0 = vector.load %arg1[%c0, %c0_0, %c0_1] : memref<2x8x128xf32, #tpu.memory_space<vmem>>, vector<2x8x128xf32>
    %1 = vector.shape_cast %0 : vector<2x8x128xf32> to vector<16x128xf32>
    %2 = arith.truncf %1 : vector<16x128xf32> to vector<16x128xbf16>
    %c0_2 = arith.constant 0 : index
    %c0_3 = arith.constant 0 : index
    %c0_4 = arith.constant 0 : index
    %3 = vector.load %arg2[%c0_2, %c0_3, %c0_4] : memref<2x8x128xf32, #tpu.memory_space<vmem>>, vector<2x8x128xf32>
    %4 = vector.shape_cast %3 : vector<2x8x128xf32> to vector<16x128xf32>
    %5 = arith.truncf %4 : vector<16x128xf32> to vector<16x128xbf16>
    %c0_5 = arith.constant 0 : index
    %c0_6 = arith.constant 0 : index
    %c0_7 = arith.constant 0 : index
    %6 = vector.load %arg3[%c0_5, %c0_6, %c0_7] : memref<2x8x128xf32, #tpu.memory_space<vmem>>, vector<2x8x128xf32>
    %7 = vector.shape_cast %6 : vector<2x8x128xf32> to vector<16x128xf32>
    %8 = arith.truncf %7 : vector<16x128xf32> to vector<16x128xbf16>
    %c0_8 = arith.constant 0 : index
    %c0_9 = arith.constant 0 : index
    %9 = vector.load %arg4[%c0_8, %c0_9] : memref<128x128xbf16, #tpu.memory_space<vmem>>, vector<128x128xbf16>
    %cst = arith.constant dense<0.000000e+00> : vector<16x128xf32>
    %10 = tpu.matmul %2, %9, %cst {dimension_numbers = #tpu.dot_dimension_numbers<[1], [0], [0], [1], [0, 0, 1, 1], [], []>} : vector<16x128xbf16>, vector<128x128xbf16>, vector<16x128xf32> -> vector<16x128xf32>
    %c0_10 = arith.constant 0 : index
    %c0_11 = arith.constant 0 : index
    %11 = vector.load %arg5[%c0_10, %c0_11] : memref<128x128xbf16, #tpu.memory_space<vmem>>, vector<128x128xbf16>
    %cst_12 = arith.constant dense<0.000000e+00> : vector<16x128xf32>
    %12 = tpu.matmul %5, %11, %cst_12 {dimension_numbers = #tpu.dot_dimension_numbers<[1], [0], [0], [1], [0, 0, 1, 1], [], []>} : vector<16x128xbf16>, vector<128x128xbf16>, vector<16x128xf32> -> vector<16x128xf32>
    %c0_13 = arith.constant 0 : index
    %c0_14 = arith.constant 0 : index
    %13 = vector.load %arg6[%c0_13, %c0_14] : memref<128x128xbf16, #tpu.memory_space<vmem>>, vector<128x128xbf16>
    %cst_15 = arith.constant dense<0.000000e+00> : vector<16x128xf32>
    %14 = tpu.matmul %8, %13, %cst_15 {dimension_numbers = #tpu.dot_dimension_numbers<[1], [0], [0], [1], [0, 0, 1, 1], [], []>} : vector<16x128xbf16>, vector<128x128xbf16>, vector<16x128xf32> -> vector<16x128xf32>
    %15 = arith.truncf %10 : vector<16x128xf32> to vector<16x128xbf16>
    %16 = arith.truncf %12 : vector<16x128xf32> to vector<16x128xbf16>
    %17 = arith.truncf %14 : vector<16x128xf32> to vector<16x128xbf16>
    %18 = vector.extract_strided_slice %15 {offsets = [0, 0], sizes = [8, 32], strides = [1, 1]} : vector<16x128xbf16> to vector<8x32xbf16>
    %19 = vector.extract_strided_slice %16 {offsets = [0, 0], sizes = [8, 32], strides = [1, 1]} : vector<16x128xbf16> to vector<8x32xbf16>
    %20 = vector.extract_strided_slice %17 {offsets = [0, 0], sizes = [8, 32], strides = [1, 1]} : vector<16x128xbf16> to vector<8x32xbf16>
    %cst_16 = arith.constant dense<0.000000e+00> : vector<8x8xf32>
    %21 = tpu.matmul %18, %19, %cst_16 {dimension_numbers = #tpu.dot_dimension_numbers<[1], [1], [0], [0], [0, 0, 1, 0], [], []>} : vector<8x32xbf16>, vector<8x32xbf16>, vector<8x8xf32> -> vector<8x8xf32>
    %cst_17 = arith.constant dense<0xFF800000> : vector<8xf32>
    %22 = vector.multi_reduction <maximumf>, %21, %cst_17 [1] : vector<8x8xf32> to vector<8xf32>
    %23 = vector.shape_cast %22 : vector<8xf32> to vector<8x1xf32>
    %24 = vector.broadcast %23 : vector<8x1xf32> to vector<8x8xf32>
    %25 = arith.subf %21, %24 : vector<8x8xf32>
    %26 = math.exp %25 : vector<8x8xf32>
    %cst_18 = arith.constant dense<0.000000e+00> : vector<8xf32>
    %27 = vector.multi_reduction <add>, %26, %cst_18 [1] : vector<8x8xf32> to vector<8xf32>
    %28 = vector.shape_cast %27 : vector<8xf32> to vector<8x1xf32>
    %29 = tpu.reciprocal %28 {approx = true} : vector<8x1xf32> -> vector<8x1xf32>
    %30 = vector.broadcast %29 : vector<8x1xf32> to vector<8x8xf32>
    %31 = arith.mulf %26, %30 : vector<8x8xf32>
    %32 = arith.truncf %31 : vector<8x8xf32> to vector<8x8xbf16>
    %cst_19 = arith.constant dense<0.000000e+00> : vector<8x32xf32>
    %33 = tpu.matmul %32, %20, %cst_19 {dimension_numbers = #tpu.dot_dimension_numbers<[1], [0], [0], [1], [0, 0, 1, 1], [], []>} : vector<8x8xbf16>, vector<8x32xbf16>, vector<8x32xf32> -> vector<8x32xf32>
    %34 = vector.extract_strided_slice %15 {offsets = [0, 32], sizes = [8, 32], strides = [1, 1]} : vector<16x128xbf16> to vector<8x32xbf16>
    %35 = vector.extract_strided_slice %16 {offsets = [0, 32], sizes = [8, 32], strides = [1, 1]} : vector<16x128xbf16> to vector<8x32xbf16>
    %36 = vector.extract_strided_slice %17 {offsets = [0, 32], sizes = [8, 32], strides = [1, 1]} : vector<16x128xbf16> to vector<8x32xbf16>
    %cst_20 = arith.constant dense<0.000000e+00> : vector<8x8xf32>
    %37 = tpu.matmul %34, %35, %cst_20 {dimension_numbers = #tpu.dot_dimension_numbers<[1], [1], [0], [0], [0, 0, 1, 0], [], []>} : vector<8x32xbf16>, vector<8x32xbf16>, vector<8x8xf32> -> vector<8x8xf32>
    %cst_21 = arith.constant dense<0xFF800000> : vector<8xf32>
    %38 = vector.multi_reduction <maximumf>, %37, %cst_21 [1] : vector<8x8xf32> to vector<8xf32>
    %39 = vector.shape_cast %38 : vector<8xf32> to vector<8x1xf32>
    %40 = vector.broadcast %39 : vector<8x1xf32> to vector<8x8xf32>
    %41 = arith.subf %37, %40 : vector<8x8xf32>
    %42 = math.exp %41 : vector<8x8xf32>
    %cst_22 = arith.constant dense<0.000000e+00> : vector<8xf32>
    %43 = vector.multi_reduction <add>, %42, %cst_22 [1] : vector<8x8xf32> to vector<8xf32>
    %44 = vector.shape_cast %43 : vector<8xf32> to vector<8x1xf32>
    %45 = tpu.reciprocal %44 {approx = true} : vector<8x1xf32> -> vector<8x1xf32>
    %46 = vector.broadcast %45 : vector<8x1xf32> to vector<8x8xf32>
    %47 = arith.mulf %42, %46 : vector<8x8xf32>
    %48 = arith.truncf %47 : vector<8x8xf32> to vector<8x8xbf16>
    %cst_23 = arith.constant dense<0.000000e+00> : vector<8x32xf32>
    %49 = tpu.matmul %48, %36, %cst_23 {dimension_numbers = #tpu.dot_dimension_numbers<[1], [0], [0], [1], [0, 0, 1, 1], [], []>} : vector<8x8xbf16>, vector<8x32xbf16>, vector<8x32xf32> -> vector<8x32xf32>
    %50 = vector.extract_strided_slice %15 {offsets = [0, 64], sizes = [8, 32], strides = [1, 1]} : vector<16x128xbf16> to vector<8x32xbf16>
    %51 = vector.extract_strided_slice %16 {offsets = [0, 64], sizes = [8, 32], strides = [1, 1]} : vector<16x128xbf16> to vector<8x32xbf16>
    %52 = vector.extract_strided_slice %17 {offsets = [0, 64], sizes = [8, 32], strides = [1, 1]} : vector<16x128xbf16> to vector<8x32xbf16>
    %cst_24 = arith.constant dense<0.000000e+00> : vector<8x8xf32>
    %53 = tpu.matmul %50, %51, %cst_24 {dimension_numbers = #tpu.dot_dimension_numbers<[1], [1], [0], [0], [0, 0, 1, 0], [], []>} : vector<8x32xbf16>, vector<8x32xbf16>, vector<8x8xf32> -> vector<8x8xf32>
    %cst_25 = arith.constant dense<0xFF800000> : vector<8xf32>
    %54 = vector.multi_reduction <maximumf>, %53, %cst_25 [1] : vector<8x8xf32> to vector<8xf32>
    %55 = vector.shape_cast %54 : vector<8xf32> to vector<8x1xf32>
    %56 = vector.broadcast %55 : vector<8x1xf32> to vector<8x8xf32>
    %57 = arith.subf %53, %56 : vector<8x8xf32>
    %58 = math.exp %57 : vector<8x8xf32>
    %cst_26 = arith.constant dense<0.000000e+00> : vector<8xf32>
    %59 = vector.multi_reduction <add>, %58, %cst_26 [1] : vector<8x8xf32> to vector<8xf32>
    %60 = vector.shape_cast %59 : vector<8xf32> to vector<8x1xf32>
    %61 = tpu.reciprocal %60 {approx = true} : vector<8x1xf32> -> vector<8x1xf32>
    %62 = vector.broadcast %61 : vector<8x1xf32> to vector<8x8xf32>
    %63 = arith.mulf %58, %62 : vector<8x8xf32>
    %64 = arith.truncf %63 : vector<8x8xf32> to vector<8x8xbf16>
    %cst_27 = arith.constant dense<0.000000e+00> : vector<8x32xf32>
    %65 = tpu.matmul %64, %52, %cst_27 {dimension_numbers = #tpu.dot_dimension_numbers<[1], [0], [0], [1], [0, 0, 1, 1], [], []>} : vector<8x8xbf16>, vector<8x32xbf16>, vector<8x32xf32> -> vector<8x32xf32>
    %66 = vector.extract_strided_slice %15 {offsets = [0, 96], sizes = [8, 32], strides = [1, 1]} : vector<16x128xbf16> to vector<8x32xbf16>
    %67 = vector.extract_strided_slice %16 {offsets = [0, 96], sizes = [8, 32], strides = [1, 1]} : vector<16x128xbf16> to vector<8x32xbf16>
    %68 = vector.extract_strided_slice %17 {offsets = [0, 96], sizes = [8, 32], strides = [1, 1]} : vector<16x128xbf16> to vector<8x32xbf16>
    %cst_28 = arith.constant dense<0.000000e+00> : vector<8x8xf32>
    %69 = tpu.matmul %66, %67, %cst_28 {dimension_numbers = #tpu.dot_dimension_numbers<[1], [1], [0], [0], [0, 0, 1, 0], [], []>} : vector<8x32xbf16>, vector<8x32xbf16>, vector<8x8xf32> -> vector<8x8xf32>
    %cst_29 = arith.constant dense<0xFF800000> : vector<8xf32>
    %70 = vector.multi_reduction <maximumf>, %69, %cst_29 [1] : vector<8x8xf32> to vector<8xf32>
    %71 = vector.shape_cast %70 : vector<8xf32> to vector<8x1xf32>
    %72 = vector.broadcast %71 : vector<8x1xf32> to vector<8x8xf32>
    %73 = arith.subf %69, %72 : vector<8x8xf32>
    %74 = math.exp %73 : vector<8x8xf32>
    %cst_30 = arith.constant dense<0.000000e+00> : vector<8xf32>
    %75 = vector.multi_reduction <add>, %74, %cst_30 [1] : vector<8x8xf32> to vector<8xf32>
    %76 = vector.shape_cast %75 : vector<8xf32> to vector<8x1xf32>
    %77 = tpu.reciprocal %76 {approx = true} : vector<8x1xf32> -> vector<8x1xf32>
    %78 = vector.broadcast %77 : vector<8x1xf32> to vector<8x8xf32>
    %79 = arith.mulf %74, %78 : vector<8x8xf32>
    %80 = arith.truncf %79 : vector<8x8xf32> to vector<8x8xbf16>
    %cst_31 = arith.constant dense<0.000000e+00> : vector<8x32xf32>
    %81 = tpu.matmul %80, %68, %cst_31 {dimension_numbers = #tpu.dot_dimension_numbers<[1], [0], [0], [1], [0, 0, 1, 1], [], []>} : vector<8x8xbf16>, vector<8x32xbf16>, vector<8x32xf32> -> vector<8x32xf32>
    %82 = tpu.concatenate %33, %49, %65, %81 in 1 : vector<8x32xf32>, vector<8x32xf32>, vector<8x32xf32>, vector<8x32xf32> -> vector<8x128xf32>
    %83 = vector.extract_strided_slice %15 {offsets = [8, 0], sizes = [8, 32], strides = [1, 1]} : vector<16x128xbf16> to vector<8x32xbf16>
    %84 = vector.extract_strided_slice %16 {offsets = [8, 0], sizes = [8, 32], strides = [1, 1]} : vector<16x128xbf16> to vector<8x32xbf16>
    %85 = vector.extract_strided_slice %17 {offsets = [8, 0], sizes = [8, 32], strides = [1, 1]} : vector<16x128xbf16> to vector<8x32xbf16>
    %cst_32 = arith.constant dense<0.000000e+00> : vector<8x8xf32>
    %86 = tpu.matmul %83, %84, %cst_32 {dimension_numbers = #tpu.dot_dimension_numbers<[1], [1], [0], [0], [0, 0, 1, 0], [], []>} : vector<8x32xbf16>, vector<8x32xbf16>, vector<8x8xf32> -> vector<8x8xf32>
    %cst_33 = arith.constant dense<0xFF800000> : vector<8xf32>
    %87 = vector.multi_reduction <maximumf>, %86, %cst_33 [1] : vector<8x8xf32> to vector<8xf32>
    %88 = vector.shape_cast %87 : vector<8xf32> to vector<8x1xf32>
    %89 = vector.broadcast %88 : vector<8x1xf32> to vector<8x8xf32>
    %90 = arith.subf %86, %89 : vector<8x8xf32>
    %91 = math.exp %90 : vector<8x8xf32>
    %cst_34 = arith.constant dense<0.000000e+00> : vector<8xf32>
    %92 = vector.multi_reduction <add>, %91, %cst_34 [1] : vector<8x8xf32> to vector<8xf32>
    %93 = vector.shape_cast %92 : vector<8xf32> to vector<8x1xf32>
    %94 = tpu.reciprocal %93 {approx = true} : vector<8x1xf32> -> vector<8x1xf32>
    %95 = vector.broadcast %94 : vector<8x1xf32> to vector<8x8xf32>
    %96 = arith.mulf %91, %95 : vector<8x8xf32>
    %97 = arith.truncf %96 : vector<8x8xf32> to vector<8x8xbf16>
    %cst_35 = arith.constant dense<0.000000e+00> : vector<8x32xf32>
    %98 = tpu.matmul %97, %85, %cst_35 {dimension_numbers = #tpu.dot_dimension_numbers<[1], [0], [0], [1], [0, 0, 1, 1], [], []>} : vector<8x8xbf16>, vector<8x32xbf16>, vector<8x32xf32> -> vector<8x32xf32>
    %99 = vector.extract_strided_slice %15 {offsets = [8, 32], sizes = [8, 32], strides = [1, 1]} : vector<16x128xbf16> to vector<8x32xbf16>
    %100 = vector.extract_strided_slice %16 {offsets = [8, 32], sizes = [8, 32], strides = [1, 1]} : vector<16x128xbf16> to vector<8x32xbf16>
    %101 = vector.extract_strided_slice %17 {offsets = [8, 32], sizes = [8, 32], strides = [1, 1]} : vector<16x128xbf16> to vector<8x32xbf16>
    %cst_36 = arith.constant dense<0.000000e+00> : vector<8x8xf32>
    %102 = tpu.matmul %99, %100, %cst_36 {dimension_numbers = #tpu.dot_dimension_numbers<[1], [1], [0], [0], [0, 0, 1, 0], [], []>} : vector<8x32xbf16>, vector<8x32xbf16>, vector<8x8xf32> -> vector<8x8xf32>
    %cst_37 = arith.constant dense<0xFF800000> : vector<8xf32>
    %103 = vector.multi_reduction <maximumf>, %102, %cst_37 [1] : vector<8x8xf32> to vector<8xf32>
    %104 = vector.shape_cast %103 : vector<8xf32> to vector<8x1xf32>
    %105 = vector.broadcast %104 : vector<8x1xf32> to vector<8x8xf32>
    %106 = arith.subf %102, %105 : vector<8x8xf32>
    %107 = math.exp %106 : vector<8x8xf32>
    %cst_38 = arith.constant dense<0.000000e+00> : vector<8xf32>
    %108 = vector.multi_reduction <add>, %107, %cst_38 [1] : vector<8x8xf32> to vector<8xf32>
    %109 = vector.shape_cast %108 : vector<8xf32> to vector<8x1xf32>
    %110 = tpu.reciprocal %109 {approx = true} : vector<8x1xf32> -> vector<8x1xf32>
    %111 = vector.broadcast %110 : vector<8x1xf32> to vector<8x8xf32>
    %112 = arith.mulf %107, %111 : vector<8x8xf32>
    %113 = arith.truncf %112 : vector<8x8xf32> to vector<8x8xbf16>
    %cst_39 = arith.constant dense<0.000000e+00> : vector<8x32xf32>
    %114 = tpu.matmul %113, %101, %cst_39 {dimension_numbers = #tpu.dot_dimension_numbers<[1], [0], [0], [1], [0, 0, 1, 1], [], []>} : vector<8x8xbf16>, vector<8x32xbf16>, vector<8x32xf32> -> vector<8x32xf32>
    %115 = vector.extract_strided_slice %15 {offsets = [8, 64], sizes = [8, 32], strides = [1, 1]} : vector<16x128xbf16> to vector<8x32xbf16>
    %116 = vector.extract_strided_slice %16 {offsets = [8, 64], sizes = [8, 32], strides = [1, 1]} : vector<16x128xbf16> to vector<8x32xbf16>
    %117 = vector.extract_strided_slice %17 {offsets = [8, 64], sizes = [8, 32], strides = [1, 1]} : vector<16x128xbf16> to vector<8x32xbf16>
    %cst_40 = arith.constant dense<0.000000e+00> : vector<8x8xf32>
    %118 = tpu.matmul %115, %116, %cst_40 {dimension_numbers = #tpu.dot_dimension_numbers<[1], [1], [0], [0], [0, 0, 1, 0], [], []>} : vector<8x32xbf16>, vector<8x32xbf16>, vector<8x8xf32> -> vector<8x8xf32>
    %cst_41 = arith.constant dense<0xFF800000> : vector<8xf32>
    %119 = vector.multi_reduction <maximumf>, %118, %cst_41 [1] : vector<8x8xf32> to vector<8xf32>
    %120 = vector.shape_cast %119 : vector<8xf32> to vector<8x1xf32>
    %121 = vector.broadcast %120 : vector<8x1xf32> to vector<8x8xf32>
    %122 = arith.subf %118, %121 : vector<8x8xf32>
    %123 = math.exp %122 : vector<8x8xf32>
    %cst_42 = arith.constant dense<0.000000e+00> : vector<8xf32>
    %124 = vector.multi_reduction <add>, %123, %cst_42 [1] : vector<8x8xf32> to vector<8xf32>
    %125 = vector.shape_cast %124 : vector<8xf32> to vector<8x1xf32>
    %126 = tpu.reciprocal %125 {approx = true} : vector<8x1xf32> -> vector<8x1xf32>
    %127 = vector.broadcast %126 : vector<8x1xf32> to vector<8x8xf32>
    %128 = arith.mulf %123, %127 : vector<8x8xf32>
    %129 = arith.truncf %128 : vector<8x8xf32> to vector<8x8xbf16>
    %cst_43 = arith.constant dense<0.000000e+00> : vector<8x32xf32>
    %130 = tpu.matmul %129, %117, %cst_43 {dimension_numbers = #tpu.dot_dimension_numbers<[1], [0], [0], [1], [0, 0, 1, 1], [], []>} : vector<8x8xbf16>, vector<8x32xbf16>, vector<8x32xf32> -> vector<8x32xf32>
    %131 = vector.extract_strided_slice %15 {offsets = [8, 96], sizes = [8, 32], strides = [1, 1]} : vector<16x128xbf16> to vector<8x32xbf16>
    %132 = vector.extract_strided_slice %16 {offsets = [8, 96], sizes = [8, 32], strides = [1, 1]} : vector<16x128xbf16> to vector<8x32xbf16>
    %133 = vector.extract_strided_slice %17 {offsets = [8, 96], sizes = [8, 32], strides = [1, 1]} : vector<16x128xbf16> to vector<8x32xbf16>
    %cst_44 = arith.constant dense<0.000000e+00> : vector<8x8xf32>
    %134 = tpu.matmul %131, %132, %cst_44 {dimension_numbers = #tpu.dot_dimension_numbers<[1], [1], [0], [0], [0, 0, 1, 0], [], []>} : vector<8x32xbf16>, vector<8x32xbf16>, vector<8x8xf32> -> vector<8x8xf32>
    %cst_45 = arith.constant dense<0xFF800000> : vector<8xf32>
    %135 = vector.multi_reduction <maximumf>, %134, %cst_45 [1] : vector<8x8xf32> to vector<8xf32>
    %136 = vector.shape_cast %135 : vector<8xf32> to vector<8x1xf32>
    %137 = vector.broadcast %136 : vector<8x1xf32> to vector<8x8xf32>
    %138 = arith.subf %134, %137 : vector<8x8xf32>
    %139 = math.exp %138 : vector<8x8xf32>
    %cst_46 = arith.constant dense<0.000000e+00> : vector<8xf32>
    %140 = vector.multi_reduction <add>, %139, %cst_46 [1] : vector<8x8xf32> to vector<8xf32>
    %141 = vector.shape_cast %140 : vector<8xf32> to vector<8x1xf32>
    %142 = tpu.reciprocal %141 {approx = true} : vector<8x1xf32> -> vector<8x1xf32>
    %143 = vector.broadcast %142 : vector<8x1xf32> to vector<8x8xf32>
    %144 = arith.mulf %139, %143 : vector<8x8xf32>
    %145 = arith.truncf %144 : vector<8x8xf32> to vector<8x8xbf16>
    %cst_47 = arith.constant dense<0.000000e+00> : vector<8x32xf32>
    %146 = tpu.matmul %145, %133, %cst_47 {dimension_numbers = #tpu.dot_dimension_numbers<[1], [0], [0], [1], [0, 0, 1, 1], [], []>} : vector<8x8xbf16>, vector<8x32xbf16>, vector<8x32xf32> -> vector<8x32xf32>
    %147 = tpu.concatenate %98, %114, %130, %146 in 1 : vector<8x32xf32>, vector<8x32xf32>, vector<8x32xf32>, vector<8x32xf32> -> vector<8x128xf32>
    %148 = tpu.concatenate %82, %147 in 0 : vector<8x128xf32>, vector<8x128xf32> -> vector<16x128xf32>
    %149 = arith.truncf %148 : vector<16x128xf32> to vector<16x128xbf16>
    %c0_48 = arith.constant 0 : index
    %c0_49 = arith.constant 0 : index
    %150 = vector.load %arg7[%c0_48, %c0_49] : memref<128x128xbf16, #tpu.memory_space<vmem>>, vector<128x128xbf16>
    %cst_50 = arith.constant dense<0.000000e+00> : vector<16x128xf32>
    %151 = tpu.matmul %149, %150, %cst_50 {dimension_numbers = #tpu.dot_dimension_numbers<[1], [0], [0], [1], [0, 0, 1, 1], [], []>} : vector<16x128xbf16>, vector<128x128xbf16>, vector<16x128xf32> -> vector<16x128xf32>
    %152 = arith.addf %151, %1 : vector<16x128xf32>
    %cst_51 = arith.constant dense<0.000000e+00> : vector<16xf32>
    %153 = vector.multi_reduction <add>, %152, %cst_51 [1] : vector<16x128xf32> to vector<16xf32>
    %154 = vector.shape_cast %153 : vector<16xf32> to vector<16x1xf32>
    %cst_52 = arith.constant 1.280000e+02 : f32
    %155 = vector.broadcast %cst_52 : f32 to vector<16x1xf32>
    %156 = arith.divf %154, %155 : vector<16x1xf32>
    %157 = vector.broadcast %156 : vector<16x1xf32> to vector<16x128xf32>
    %158 = arith.subf %152, %157 : vector<16x128xf32>
    %159 = arith.mulf %158, %158 : vector<16x128xf32>
    %cst_53 = arith.constant dense<0.000000e+00> : vector<16xf32>
    %160 = vector.multi_reduction <add>, %159, %cst_53 [1] : vector<16x128xf32> to vector<16xf32>
    %161 = vector.shape_cast %160 : vector<16xf32> to vector<16x1xf32>
    %cst_54 = arith.constant 1.280000e+02 : f32
    %162 = vector.broadcast %cst_54 : f32 to vector<16x1xf32>
    %163 = arith.divf %161, %162 : vector<16x1xf32>
    %164 = vector.broadcast %156 : vector<16x1xf32> to vector<16x128xf32>
    %165 = arith.subf %152, %164 : vector<16x128xf32>
    %cst_55 = arith.constant 9.99999974E-6 : f32
    %166 = vector.broadcast %cst_55 : f32 to vector<16x1xf32>
    %167 = arith.addf %163, %166 : vector<16x1xf32>
    %168 = math.rsqrt %167 : vector<16x1xf32>
    %169 = vector.broadcast %168 : vector<16x1xf32> to vector<16x128xf32>
    %170 = arith.mulf %165, %169 : vector<16x128xf32>
    %171 = vector.shape_cast %170 : vector<16x128xf32> to vector<2x8x128xf32>
    %c0_56 = arith.constant 0 : index
    %c0_57 = arith.constant 0 : index
    %c0_58 = arith.constant 0 : index
    %172 = vector.load %arg8[%c0_56, %c0_57, %c0_58] : memref<2x8x128xf32, #tpu.memory_space<vmem>>, vector<2x8x128xf32>
    tpu.vector_store %arg8[%c0_56, %c0_57, %c0_58], %171 {strides = array<i32>} : memref<2x8x128xf32, #tpu.memory_space<vmem>>, vector<2x8x128xf32>,
    return
  }
  func.func @transform_0(%arg0: i32) -> (i32, i32, i32) {
    %c0_i32 = arith.constant 0 : i32
    %c0_i32_0 = arith.constant 0 : i32
    %c0_i32_1 = arith.constant 0 : i32
    %c0_i32_2 = arith.constant 0 : i32
    return %c0_i32, %c0_i32_0, %c0_i32_1 : i32, i32, i32
  }
  func.func @transform_1(%arg0: i32) -> (i32, i32, i32) {
    %c0_i32 = arith.constant 0 : i32
    %c0_i32_0 = arith.constant 0 : i32
    %c0_i32_1 = arith.constant 0 : i32
    %c0_i32_2 = arith.constant 0 : i32
    return %c0_i32, %c0_i32_0, %c0_i32_1 : i32, i32, i32
  }
  func.func @transform_2(%arg0: i32) -> (i32, i32, i32) {
    %c0_i32 = arith.constant 0 : i32
    %c0_i32_0 = arith.constant 0 : i32
    %c0_i32_1 = arith.constant 0 : i32
    %c0_i32_2 = arith.constant 0 : i32
    return %c0_i32, %c0_i32_0, %c0_i32_1 : i32, i32, i32
  }
  func.func @transform_3(%arg0: i32) -> (i32, i32) {
    %c0_i32 = arith.constant 0 : i32
    %c0_i32_0 = arith.constant 0 : i32
    %c0_i32_1 = arith.constant 0 : i32
    return %c0_i32, %c0_i32_0 : i32, i32
  }
  func.func @transform_4(%arg0: i32) -> (i32, i32) {
    %c0_i32 = arith.constant 0 : i32
    %c0_i32_0 = arith.constant 0 : i32
    %c0_i32_1 = arith.constant 0 : i32
    return %c0_i32, %c0_i32_0 : i32, i32
  }
  func.func @transform_5(%arg0: i32) -> (i32, i32) {
    %c0_i32 = arith.constant 0 : i32
    %c0_i32_0 = arith.constant 0 : i32
    %c0_i32_1 = arith.constant 0 : i32
    return %c0_i32, %c0_i32_0 : i32, i32
  }
  func.func @transform_6(%arg0: i32) -> (i32, i32) {
    %c0_i32 = arith.constant 0 : i32
    %c0_i32_0 = arith.constant 0 : i32
    %c0_i32_1 = arith.constant 0 : i32
    return %c0_i32, %c0_i32_0 : i32, i32
  }
  func.func @transform_7(%arg0: i32) -> (i32, i32, i32) {
    %c0_i32 = arith.constant 0 : i32
    %c0_i32_0 = arith.constant 0 : i32
    %c0_i32_1 = arith.constant 0 : i32
    %c0_i32_2 = arith.constant 0 : i32
    return %c0_i32, %c0_i32_0, %c0_i32_1 : i32, i32, i32
  }
}

</mosaic_0001>

<llo_original>
// kernel: tpu_custom_call.1
$region0: #{tpu_custom_call.1}
  #allocation0 [shape = 'u32[]', space=smem, size = 0x4, offset = 0x4, fixed_abs, tag = 'smem constant byte address 0x4 - core index']
  #allocation1 [shape = 'u32[72,128]{1,0:T(1,128)}', space=vmem, size = 0x9000, scoped, tag = 'internal scratch']
  %s0 = inlined_call_operand.hbm [shape: f32[2,8,128], index: 0, kind: input, shape index: {}]
  %s1 = inlined_call_operand.hbm [shape: f32[2,8,128], index: 1, kind: input, shape index: {}]
  %s2 = inlined_call_operand.hbm [shape: f32[2,8,128], index: 2, kind: input, shape index: {}]
  %s3 = inlined_call_operand.hbm [shape: bf16[128,128], index: 3, kind: input, shape index: {}]
  %s4 = inlined_call_operand.hbm [shape: bf16[128,128], index: 4, kind: input, shape index: {}]
  %s5 = inlined_call_operand.hbm [shape: bf16[128,128], index: 5, kind: input, shape index: {}]
  %s6 = inlined_call_operand.hbm [shape: bf16[128,128], index: 6, kind: input, shape index: {}]
  %s7 = inlined_call_operand.hbm [shape: f32[2,8,128], index: 7, kind: output, shape index: {}]
  %s8 = sld [smem:[#allocation0]]
  $region66: #{tpu_custom_call.1} parent=0
    _
  %s10 = ssub.s32 1, %s8
  %s11 = scalar_select 0, %s10, %s8
  $region1: #{tpu_custom_call.1} parent=0
    #allocation2 [shape = 'u8[8192]{0}', space=vmem, size = 0x2000, scoped, tag = 'input window, operand 0, single buffered']
    #allocation3 [shape = 's32[1]{0}', space=sflag, size = 0x4, scoped, tag = 'scoped memory for tpu_custom_call.1']
    #allocation4 [shape = 's32[1]{0}', space=sflag, size = 0x4, scoped, tag = 'scoped memory for tpu_custom_call.1']
    #allocation5 [shape = 'u8[8192]{0}', space=vmem, size = 0x2000, scoped, tag = 'input window, operand 1, single buffered']
    #allocation6 [shape = 's32[1]{0}', space=sflag, size = 0x4, scoped, tag = 'scoped memory for tpu_custom_call.1']
    #allocation7 [shape = 'u8[8192]{0}', space=vmem, size = 0x2000, scoped, tag = 'input window, operand 2, single buffered']
    #allocation8 [shape = 'u8[32768]{0}', space=vmem, size = 0x8000, scoped, tag = 'input window, operand 3, single buffered']
    #allocation9 [shape = 's32[1]{0}', space=sflag, size = 0x4, scoped, tag = 'scoped memory for tpu_custom_call.1']
    #allocation10 [shape = 'u8[32768]{0}', space=vmem, size = 0x8000, scoped, tag = 'input window, operand 4, single buffered']
    #allocation11 [shape = 'u8[32768]{0}', space=vmem, size = 0x8000, scoped, tag = 'input window, operand 5, single buffered']
    #allocation12 [shape = 's32[1]{0}', space=sflag, size = 0x4, scoped, tag = 'scoped memory for tpu_custom_call.1']
    #allocation13 [shape = 'u8[32768]{0}', space=vmem, size = 0x8000, scoped, tag = 'input window, operand 6, single buffered']
    #allocation14 [shape = 'u8[8192]{0}', space=vmem, size = 0x2000, scoped, tag = 'output window, operand 0, single buffered']
    %12 = vsyncpa [#allocation3], 0
    %13 = vsyncpa [#allocation6], 0
    %14 = vsyncpa [#allocation9], 0
    %15 = vsyncpa [#allocation12], 0
    %16 = vsyncpa [#allocation4], 0
    // Predicated region
    $region2: #{tpu_custom_call.1} parent=1 // pred_check
      _
    $region3: #{tpu_custom_call.1} parent=1 // pred_check_branch
      %18 = sbr.rel (0) target = $region5
    $region4: #{tpu_custom_call.1} parent=1 // pred_region
      %20 = vsyncadd [#allocation3], 0
      %s21 = sshll.u32 %s0, 4
      %s22 = int_to_ptr.hbm [resolvable:$true] %s21
      %s23 = sshll.u32 [#allocation2], 4
      %s24 = int_to_ptr.vmem [resolvable:$true] %s23
      %29 = dma.hbm_to_vmem [thread:$0]  %s22, 256, %s24, [#allocation3], 128, 128, 8
    $region5: #{tpu_custom_call.1} parent=1 // pred_fallthru
      _
    // Predicated region
    $region6: #{tpu_custom_call.1} parent=1 // pred_check
      _
    $region7: #{tpu_custom_call.1} parent=1 // pred_check_branch
      %31 = sbr.rel (0) target = $region9
    $region8: #{tpu_custom_call.1} parent=1 // pred_region
      %33 = vsyncadd [#allocation6], 0
      %s34 = sshll.u32 %s1, 4
      %s35 = int_to_ptr.hbm [resolvable:$true] %s34
      %s36 = sshll.u32 [#allocation5], 4
      %s37 = int_to_ptr.vmem [resolvable:$true] %s36
      %42 = dma.hbm_to_vmem [thread:$0]  %s35, 256, %s37, [#allocation6], 128, 128, 8
    $region9: #{tpu_custom_call.1} parent=1 // pred_fallthru
      _
    // Predicated region
    $region10: #{tpu_custom_call.1} parent=1 // pred_check
      _
    $region11: #{tpu_custom_call.1} parent=1 // pred_check_branch
      %44 = sbr.rel (0) target = $region13
    $region12: #{tpu_custom_call.1} parent=1 // pred_region
      %46 = vsyncadd [#allocation6], 0
      %s47 = sshll.u32 %s2, 4
      %s48 = int_to_ptr.hbm [resolvable:$true] %s47
      %s49 = sshll.u32 [#allocation7], 4
      %s50 = int_to_ptr.vmem [resolvable:$true] %s49
      %55 = dma.hbm_to_vmem [thread:$0]  %s48, 256, %s50, [#allocation6], 128, 128, 8
    $region13: #{tpu_custom_call.1} parent=1 // pred_fallthru
      _
    // Predicated region
    $region14: #{tpu_custom_call.1} parent=1 // pred_check
      _
    $region15: #{tpu_custom_call.1} parent=1 // pred_check_branch
      %57 = sbr.rel (0) target = $region17
    $region16: #{tpu_custom_call.1} parent=1 // pred_region
      %59 = vsyncadd [#allocation9], 0
      %s60 = sshll.u32 %s3, 4
      %s61 = int_to_ptr.hbm [resolvable:$true] %s60
      %s62 = sshll.u32 [#allocation8], 4
      %s63 = int_to_ptr.vmem [resolvable:$true] %s62
      %68 = dma.hbm_to_vmem [thread:$0]  %s61, 1024, %s63, [#allocation9], 64, 64, 4
    $region17: #{tpu_custom_call.1} parent=1 // pred_fallthru
      _
    // Predicated region
    $region18: #{tpu_custom_call.1} parent=1 // pred_check
      _
    $region19: #{tpu_custom_call.1} parent=1 // pred_check_branch
      %70 = sbr.rel (0) target = $region21
    $region20: #{tpu_custom_call.1} parent=1 // pred_region
      %72 = vsyncadd [#allocation9], 0
      %s73 = sshll.u32 %s4, 4
      %s74 = int_to_ptr.hbm [resolvable:$true] %s73
      %s75 = sshll.u32 [#allocation10], 4
      %s76 = int_to_ptr.vmem [resolvable:$true] %s75
      %81 = dma.hbm_to_vmem [thread:$0]  %s74, 1024, %s76, [#allocation9], 64, 64, 4
    $region21: #{tpu_custom_call.1} parent=1 // pred_fallthru
      _
    // Predicated region
    $region22: #{tpu_custom_call.1} parent=1 // pred_check
      _
    $region23: #{tpu_custom_call.1} parent=1 // pred_check_branch
      %83 = sbr.rel (0) target = $region25
    $region24: #{tpu_custom_call.1} parent=1 // pred_region
      %85 = vsyncadd [#allocation12], 0
      %s86 = sshll.u32 %s5, 4
      %s87 = int_to_ptr.hbm [resolvable:$true] %s86
      %s88 = sshll.u32 [#allocation11], 4
      %s89 = int_to_ptr.vmem [resolvable:$true] %s88
      %94 = dma.hbm_to_vmem [thread:$0]  %s87, 1024, %s89, [#allocation12], 64, 64, 4
    $region25: #{tpu_custom_call.1} parent=1 // pred_fallthru
      _
    // Predicated region
    $region26: #{tpu_custom_call.1} parent=1 // pred_check
      _
    $region27: #{tpu_custom_call.1} parent=1 // pred_check_branch
      %96 = sbr.rel (0) target = $region29
    $region28: #{tpu_custom_call.1} parent=1 // pred_region
      %98 = vsyncadd [#allocation12], 0
      %s99 = sshll.u32 %s6, 4
      %s100 = int_to_ptr.hbm [resolvable:$true] %s99
      %s101 = sshll.u32 [#allocation13], 4
      %s102 = int_to_ptr.vmem [resolvable:$true] %s101
      %107 = dma.hbm_to_vmem [thread:$0]  %s100, 1024, %s102, [#allocation12], 64, 64, 4
    $region29: #{tpu_custom_call.1} parent=1 // pred_fallthru
      _
    // Predicated region
    $region30: #{tpu_custom_call.1} parent=1 // pred_check
      _
    $region31: #{tpu_custom_call.1} parent=1 // pred_check_branch
      %109 = sbr.rel (0) target = $region33
    $region32: #{tpu_custom_call.1} parent=1 // pred_region
      %111 = dma.done [#allocation3], 256
    $region33: #{tpu_custom_call.1} parent=1 // pred_fallthru
      _
    // Predicated region
    $region34: #{tpu_custom_call.1} parent=1 // pred_check
      _
    $region35: #{tpu_custom_call.1} parent=1 // pred_check_branch
      %113 = sbr.rel (0) target = $region37
    $region36: #{tpu_custom_call.1} parent=1 // pred_region
      %115 = dma.done [#allocation6], 256
    $region37: #{tpu_custom_call.1} parent=1 // pred_fallthru
      _
    // Predicated region
    $region38: #{tpu_custom_call.1} parent=1 // pred_check
      _
    $region39: #{tpu_custom_call.1} parent=1 // pred_check_branch
      %117 = sbr.rel (0) target = $region41
    $region40: #{tpu_custom_call.1} parent=1 // pred_region
      %119 = dma.done [#allocation6], 256
    $region41: #{tpu_custom_call.1} parent=1 // pred_fallthru
      _
    // Predicated region
    $region42: #{tpu_custom_call.1} parent=1 // pred_check
      _
    $region43: #{tpu_custom_call.1} parent=1 // pred_check_branch
      %121 = sbr.rel (0) target = $region45
    $region44: #{tpu_custom_call.1} parent=1 // pred_region
      %123 = dma.done [#allocation9], 1024
    $region45: #{tpu_custom_call.1} parent=1 // pred_fallthru
      _
    // Predicated region
    $region46: #{tpu_custom_call.1} parent=1 // pred_check
      _
    $region47: #{tpu_custom_call.1} parent=1 // pred_check_branch
      %125 = sbr.rel (0) target = $region49
    $region48: #{tpu_custom_call.1} parent=1 // pred_region
      %127 = dma.done [#allocation9], 1024
    $region49: #{tpu_custom_call.1} parent=1 // pred_fallthru
      _
    // Predicated region
    $region50: #{tpu_custom_call.1} parent=1 // pred_check
      _
    $region51: #{tpu_custom_call.1} parent=1 // pred_check_branch
      %129 = sbr.rel (0) target = $region53
    $region52: #{tpu_custom_call.1} parent=1 // pred_region
      %131 = dma.done [#allocation12], 1024
    $region53: #{tpu_custom_call.1} parent=1 // pred_fallthru
      _
    // Predicated region
    $region54: #{tpu_custom_call.1} parent=1 // pred_check
      _
    $region55: #{tpu_custom_call.1} parent=1 // pred_check_branch
      %133 = sbr.rel (0) target = $region57
    $region56: #{tpu_custom_call.1} parent=1 // pred_region
      %135 = dma.done [#allocation12], 1024
    $region57: #{tpu_custom_call.1} parent=1 // pred_fallthru
      _
    %v137 = vld [vmem:[#allocation2] sm:$0xff]
    %v138 = vld [vmem:[#allocation2 + $0x8] sm:$0xff]
    %v139 = vpack.c.bf16 %v138, %v137
    %v140 = vld [vmem:[#allocation5] sm:$0xff]
    %v141 = vld [vmem:[#allocation5 + $0x8] sm:$0xff]
    %v142 = vpack.c.bf16 %v141, %v140
    %v143 = vld [vmem:[#allocation7] sm:$0xff]
    %v144 = vld [vmem:[#allocation7 + $0x8] sm:$0xff]
    %v145 = vpack.c.bf16 %v144, %v143
    %v146 = vld [vmem:[#allocation8] sm:$0xf]
    %v147 = vld [vmem:[#allocation8 + $0x4] sm:$0xf]
    %v148 = vld [vmem:[#allocation8 + $0x8] sm:$0xf]
    %v149 = vld [vmem:[#allocation8 + $0xc] sm:$0xf]
    %v150 = vld [vmem:[#allocation8 + $0x10] sm:$0xf]
    %v151 = vld [vmem:[#allocation8 + $0x14] sm:$0xf]
    %v152 = vld [vmem:[#allocation8 + $0x18] sm:$0xf]
    %v153 = vld [vmem:[#allocation8 + $0x1c] sm:$0xf]
    %v154 = vld [vmem:[#allocation8 + $0x20] sm:$0xf]
    %v155 = vld [vmem:[#allocation8 + $0x24] sm:$0xf]
    %v156 = vld [vmem:[#allocation8 + $0x28] sm:$0xf]
    %v157 = vld [vmem:[#allocation8 + $0x2c] sm:$0xf]
    %v158 = vld [vmem:[#allocation8 + $0x30] sm:$0xf]
    %v159 = vld [vmem:[#allocation8 + $0x34] sm:$0xf]
    %v160 = vld [vmem:[#allocation8 + $0x38] sm:$0xf]
    %v161 = vld [vmem:[#allocation8 + $0x3c] sm:$0xf]
    %v178 = vunpack.c.l.b16 %v146
    %v179 = vunpack.c.l.b16 %v147
    %v180 = vunpack.c.l.b16 %v148
    %v181 = vunpack.c.l.b16 %v149
    %v182 = vunpack.c.l.b16 %v150
    %v183 = vunpack.c.l.b16 %v151
    %v184 = vunpack.c.l.b16 %v152
    %v185 = vunpack.c.l.b16 %v153
    %v186 = vunpack.c.l.b16 %v154
    %v187 = vunpack.c.l.b16 %v155
    %v188 = vunpack.c.l.b16 %v156
    %v189 = vunpack.c.l.b16 %v157
    %v190 = vunpack.c.l.b16 %v158
    %v191 = vunpack.c.l.b16 %v159
    %v192 = vunpack.c.l.b16 %v160
    %v193 = vunpack.c.l.b16 %v161
    %v194 = vpack.c.b16 %v179, %v178
    %v195 = vpack.c.b16 %v181, %v180
    %v196 = vpack.c.b16 %v183, %v182
    %v197 = vpack.c.b16 %v185, %v184
    %v198 = vpack.c.b16 %v187, %v186
    %v199 = vpack.c.b16 %v189, %v188
    %v200 = vpack.c.b16 %v191, %v190
    %v201 = vpack.c.b16 %v193, %v192
    %210 = vmatpush.bf16.msra.mxu0 %v201
    %211 = vmatpush.bf16.msra.mxu0 %v200
    %212 = vmatpush.bf16.msra.mxu0 %v199
    %213 = vmatpush.bf16.msra.mxu0 %v198
    %214 = vmatpush.bf16.msra.mxu0 %v197
    %215 = vmatpush.bf16.msra.mxu0 %v196
    %216 = vmatpush.bf16.msra.mxu0 %v195
    %217 = vmatpush.bf16.msra.mxu0 %v194
    %218 = vmatmul.bf16.gmra.mxu0 %v139
    %v219 = vpop.f32.mrf.mxu0
    %v220 = vadd.f32 0.0, %v219
    %v221 = vpop.f32.mrf.mxu0
    %v222 = vadd.f32 0.0, %v221
    %223 = vdwg.mxu0
    %v224 = vld [vmem:[#allocation10] sm:$0xf]
    %v225 = vld [vmem:[#allocation10 + $0x4] sm:$0xf]
    %v226 = vld [vmem:[#allocation10 + $0x8] sm:$0xf]
    %v227 = vld [vmem:[#allocation10 + $0xc] sm:$0xf]
    %v228 = vld [vmem:[#allocation10 + $0x10] sm:$0xf]
    %v229 = vld [vmem:[#allocation10 + $0x14] sm:$0xf]
    %v230 = vld [vmem:[#allocation10 + $0x18] sm:$0xf]
    %v231 = vld [vmem:[#allocation10 + $0x1c] sm:$0xf]
    %v232 = vld [vmem:[#allocation10 + $0x20] sm:$0xf]
    %v233 = vld [vmem:[#allocation10 + $0x24] sm:$0xf]
    %v234 = vld [vmem:[#allocation10 + $0x28] sm:$0xf]
    %v235 = vld [vmem:[#allocation10 + $0x2c] sm:$0xf]
    %v236 = vld [vmem:[#allocation10 + $0x30] sm:$0xf]
    %v237 = vld [vmem:[#allocation10 + $0x34] sm:$0xf]
    %v238 = vld [vmem:[#allocation10 + $0x38] sm:$0xf]
    %v239 = vld [vmem:[#allocation10 + $0x3c] sm:$0xf]
    %v256 = vunpack.c.l.b16 %v224
    %v257 = vunpack.c.l.b16 %v225
    %v258 = vunpack.c.l.b16 %v226
    %v259 = vunpack.c.l.b16 %v227
    %v260 = vunpack.c.l.b16 %v228
    %v261 = vunpack.c.l.b16 %v229
    %v262 = vunpack.c.l.b16 %v230
    %v263 = vunpack.c.l.b16 %v231
    %v264 = vunpack.c.l.b16 %v232
    %v265 = vunpack.c.l.b16 %v233
    %v266 = vunpack.c.l.b16 %v234
    %v267 = vunpack.c.l.b16 %v235
    %v268 = vunpack.c.l.b16 %v236
    %v269 = vunpack.c.l.b16 %v237
    %v270 = vunpack.c.l.b16 %v238
    %v271 = vunpack.c.l.b16 %v239
    %v272 = vpack.c.b16 %v257, %v256
    %v273 = vpack.c.b16 %v259, %v258
    %v274 = vpack.c.b16 %v261, %v260
    %v275 = vpack.c.b16 %v263, %v262
    %v276 = vpack.c.b16 %v265, %v264
    %v277 = vpack.c.b16 %v267, %v266
    %v278 = vpack.c.b16 %v269, %v268
    %v279 = vpack.c.b16 %v271, %v270
    %288 = vmatpush.bf16.msra.mxu0 %v279
    %289 = vmatpush.bf16.msra.mxu0 %v278
    %290 = vmatpush.bf16.msra.mxu0 %v277
    %291 = vmatpush.bf16.msra.mxu0 %v276
    %292 = vmatpush.bf16.msra.mxu0 %v275
    %293 = vmatpush.bf16.msra.mxu0 %v274
    %294 = vmatpush.bf16.msra.mxu0 %v273
    %295 = vmatpush.bf16.msra.mxu0 %v272
    %296 = vmatmul.bf16.gmra.mxu0 %v142
    %v297 = vpop.f32.mrf.mxu0
    %v298 = vadd.f32 0.0, %v297
    %v299 = vpop.f32.mrf.mxu0
    %v300 = vadd.f32 0.0, %v299
    %301 = vdwg.mxu0
    %v302 = vld [vmem:[#allocation11] sm:$0xf]
    %v303 = vld [vmem:[#allocation11 + $0x4] sm:$0xf]
    %v304 = vld [vmem:[#allocation11 + $0x8] sm:$0xf]
    %v305 = vld [vmem:[#allocation11 + $0xc] sm:$0xf]
    %v306 = vld [vmem:[#allocation11 + $0x10] sm:$0xf]
    %v307 = vld [vmem:[#allocation11 + $0x14] sm:$0xf]
    %v308 = vld [vmem:[#allocation11 + $0x18] sm:$0xf]
    %v309 = vld [vmem:[#allocation11 + $0x1c] sm:$0xf]
    %v310 = vld [vmem:[#allocation11 + $0x20] sm:$0xf]
    %v311 = vld [vmem:[#allocation11 + $0x24] sm:$0xf]
    %v312 = vld [vmem:[#allocation11 + $0x28] sm:$0xf]
    %v313 = vld [vmem:[#allocation11 + $0x2c] sm:$0xf]
    %v314 = vld [vmem:[#allocation11 + $0x30] sm:$0xf]
    %v315 = vld [vmem:[#allocation11 + $0x34] sm:$0xf]
    %v316 = vld [vmem:[#allocation11 + $0x38] sm:$0xf]
    %v317 = vld [vmem:[#allocation11 + $0x3c] sm:$0xf]
    %v334 = vunpack.c.l.b16 %v302
    %v335 = vunpack.c.l.b16 %v303
    %v336 = vunpack.c.l.b16 %v304
    %v337 = vunpack.c.l.b16 %v305
    %v338 = vunpack.c.l.b16 %v306
    %v339 = vunpack.c.l.b16 %v307
    %v340 = vunpack.c.l.b16 %v308
    %v341 = vunpack.c.l.b16 %v309
    %v342 = vunpack.c.l.b16 %v310
    %v343 = vunpack.c.l.b16 %v311
    %v344 = vunpack.c.l.b16 %v312
    %v345 = vunpack.c.l.b16 %v313
    %v346 = vunpack.c.l.b16 %v314
    %v347 = vunpack.c.l.b16 %v315
    %v348 = vunpack.c.l.b16 %v316
    %v349 = vunpack.c.l.b16 %v317
    %v350 = vpack.c.b16 %v335, %v334
    %v351 = vpack.c.b16 %v337, %v336
    %v352 = vpack.c.b16 %v339, %v338
    %v353 = vpack.c.b16 %v341, %v340
    %v354 = vpack.c.b16 %v343, %v342
    %v355 = vpack.c.b16 %v345, %v344
    %v356 = vpack.c.b16 %v347, %v346
    %v357 = vpack.c.b16 %v349, %v348
    %366 = vmatpush.bf16.msra.mxu0 %v357
    %367 = vmatpush.bf16.msra.mxu0 %v356
    %368 = vmatpush.bf16.msra.mxu0 %v355
    %369 = vmatpush.bf16.msra.mxu0 %v354
    %370 = vmatpush.bf16.msra.mxu0 %v353
    %371 = vmatpush.bf16.msra.mxu0 %v352
    %372 = vmatpush.bf16.msra.mxu0 %v351
    %373 = vmatpush.bf16.msra.mxu0 %v350
    %374 = vmatmul.bf16.gmra.mxu0 %v145
    %v375 = vpop.f32.mrf.mxu0
    %v376 = vadd.f32 0.0, %v375
    %v377 = vpop.f32.mrf.mxu0
    %v378 = vadd.f32 0.0, %v377
    %379 = vdwg.mxu0
    %v380 = vpack.c.bf16 %v220, %v220
    %v381 = vpack.c.bf16 %v222, %v222
    %v382 = vpack.c.bf16 %v298, %v298
    %v383 = vpack.c.bf16 %v300, %v300
    %v384 = vpack.c.bf16 %v376, %v376
    %v385 = vpack.c.bf16 %v378, %v378
    %vm386 = vcmask 261120
    %v388 = vsel %vm386, %v380, 0
    %v391 = vsel %vm386, %v382, 0
    %393 = vmatpush.bf16.xpose.msra.mxu0 0
    %394 = vmatpush.bf16.xpose.msra.mxu0 0
    %395 = vmatpush.bf16.xpose.msra.mxu0 0
    %396 = vmatpush.bf16.xpose.msra.mxu0 0
    %397 = vmatpush.bf16.xpose.msra.mxu0 0
    %398 = vmatpush.bf16.xpose.msra.mxu0 0
    %399 = vmatpush.bf16.xpose.msra.mxu0 0
    %400 = vmatpush.bf16.xpose.msra.mxu0 %v391
    %401 = vmatmul.bf16.gmra.mxu0 %v388
    %v402 = vpop.f32.mrf.mxu0
    %v403 = vadd.f32 0.0, %v402
    %v404 = vpop.f32.mrf.mxu0
    %405 = vdwg.mxu0
    %vm406 = vcmask 64512
    %v407 = vsel %vm406, %v403, -inf
    %408 = vmax.xlane.f32.xlu0 %v407
    %v409 = vpop.xlane.xlu0 %408
    %v410 = vsub.f32 %v403, %v409
    %v411 = vmul.f32 %v410, 1.442695
    %v412 = vpow.pop %v411
    %v413 = vsel %vm406, %v412, 0.0
    %414 = vadd.xlane.f32.xlu0 %v413
    %v415 = vpop.xlane.xlu0 %414
    %v416 = vrcp.pop %v415
    %v417 = vmul.f32 %v412, %v416
    %v418 = vpack.c.bf16 %v417, %v417
    %v420 = vsel %vm406, %v418, 0
    %vm422 = vcmask 1043456
    %v424 = vsel %vm422, %v384, 0
    %426 = vmatpush.bf16.msra.mxu0 0
    %427 = vmatpush.bf16.msra.mxu0 0
    %428 = vmatpush.bf16.msra.mxu0 0
    %429 = vmatpush.bf16.msra.mxu0 0
    %430 = vmatpush.bf16.msra.mxu0 0
    %431 = vmatpush.bf16.msra.mxu0 0
    %432 = vmatpush.bf16.msra.mxu0 0
    %433 = vmatpush.bf16.msra.mxu0 %v424
    %434 = vmatmul.bf16.gmra.mxu0 %v420
    %v435 = vpop.f32.mrf.mxu0
    %v436 = vadd.f32 0.0, %v435
    %v437 = vpop.f32.mrf.mxu0
    %438 = vdwg.mxu0
    %v440 = vunpack.c.l.b16 %v380
    %v441 = vpack.c.b16 %v440, %v440
    %442 = vrot.lane.b32.xlu0 %v441, 96
    %v443 = vpop.permute.xlu0 %442
    %v445 = vunpack.c.l.b16 %v382
    %v446 = vpack.c.b16 %v445, %v445
    %447 = vrot.lane.b32.xlu0 %v446, 96
    %v448 = vpop.permute.xlu0 %447
    %v450 = vsel %vm386, %v443, 0
    %v453 = vsel %vm386, %v448, 0
    %455 = vmatpush.bf16.xpose.msra.mxu0 0
    %456 = vmatpush.bf16.xpose.msra.mxu0 0
    %457 = vmatpush.bf16.xpose.msra.mxu0 0
    %458 = vmatpush.bf16.xpose.msra.mxu0 0
    %459 = vmatpush.bf16.xpose.msra.mxu0 0
    %460 = vmatpush.bf16.xpose.msra.mxu0 0
    %461 = vmatpush.bf16.xpose.msra.mxu0 0
    %462 = vmatpush.bf16.xpose.msra.mxu0 %v453
    %463 = vmatmul.bf16.gmra.mxu0 %v450
    %v464 = vpop.f32.mrf.mxu0
    %v465 = vadd.f32 0.0, %v464
    %v466 = vpop.f32.mrf.mxu0
    %467 = vdwg.mxu0
    %v468 = vsel %vm406, %v465, -inf
    %469 = vmax.xlane.f32.xlu0 %v468
    %v470 = vpop.xlane.xlu0 %469
    %v471 = vsub.f32 %v465, %v470
    %v472 = vmul.f32 %v471, 1.442695
    %v473 = vpow.pop %v472
    %v474 = vsel %vm406, %v473, 0.0
    %475 = vadd.xlane.f32.xlu0 %v474
    %v476 = vpop.xlane.xlu0 %475
    %v477 = vrcp.pop %v476
    %v478 = vmul.f32 %v473, %v477
    %v479 = vpack.c.bf16 %v478, %v478
    %v481 = vunpack.c.l.b16 %v384
    %v482 = vpack.c.b16 %v481, %v481
    %483 = vrot.lane.b32.xlu0 %v482, 96
    %v484 = vpop.permute.xlu0 %483
    %v486 = vsel %vm406, %v479, 0
    %v489 = vsel %vm422, %v484, 0
    %491 = vmatpush.bf16.msra.mxu0 0
    %492 = vmatpush.bf16.msra.mxu0 0
    %493 = vmatpush.bf16.msra.mxu0 0
    %494 = vmatpush.bf16.msra.mxu0 0
    %495 = vmatpush.bf16.msra.mxu0 0
    %496 = vmatpush.bf16.msra.mxu0 0
    %497 = vmatpush.bf16.msra.mxu0 0
    %498 = vmatpush.bf16.msra.mxu0 %v489
    %499 = vmatmul.bf16.gmra.mxu0 %v486
    %v500 = vpop.f32.mrf.mxu0
    %v501 = vadd.f32 0.0, %v500
    %v502 = vpop.f32.mrf.mxu0
    %503 = vdwg.mxu0
    %504 = vrot.lane.b32.xlu0 %v441, 64
    %v505 = vpop.permute.xlu0 %504
    %506 = vrot.lane.b32.xlu0 %v446, 64
    %v507 = vpop.permute.xlu0 %506
    %v509 = vsel %vm386, %v505, 0
    %v512 = vsel %vm386, %v507, 0
    %514 = vmatpush.bf16.xpose.msra.mxu0 0
    %515 = vmatpush.bf16.xpose.msra.mxu0 0
    %516 = vmatpush.bf16.xpose.msra.mxu0 0
    %517 = vmatpush.bf16.xpose.msra.mxu0 0
    %518 = vmatpush.bf16.xpose.msra.mxu0 0
    %519 = vmatpush.bf16.xpose.msra.mxu0 0
    %520 = vmatpush.bf16.xpose.msra.mxu0 0
    %521 = vmatpush.bf16.xpose.msra.mxu0 %v512
    %522 = vmatmul.bf16.gmra.mxu0 %v509
    %v523 = vpop.f32.mrf.mxu0
    %v524 = vadd.f32 0.0, %v523
    %v525 = vpop.f32.mrf.mxu0
    %526 = vdwg.mxu0
    %v527 = vsel %vm406, %v524, -inf
    %528 = vmax.xlane.f32.xlu0 %v527
    %v529 = vpop.xlane.xlu0 %528
    %v530 = vsub.f32 %v524, %v529
    %v531 = vmul.f32 %v530, 1.442695
    %v532 = vpow.pop %v531
    %v533 = vsel %vm406, %v532, 0.0
    %534 = vadd.xlane.f32.xlu0 %v533
    %v535 = vpop.xlane.xlu0 %534
    %v536 = vrcp.pop %v535
    %v537 = vmul.f32 %v532, %v536
    %v538 = vpack.c.bf16 %v537, %v537
    %539 = vrot.lane.b32.xlu0 %v482, 64
    %v540 = vpop.permute.xlu0 %539
    %v542 = vsel %vm406, %v538, 0
    %v545 = vsel %vm422, %v540, 0
    %547 = vmatpush.bf16.msra.mxu0 0
    %548 = vmatpush.bf16.msra.mxu0 0
    %549 = vmatpush.bf16.msra.mxu0 0
    %550 = vmatpush.bf16.msra.mxu0 0
    %551 = vmatpush.bf16.msra.mxu0 0
    %552 = vmatpush.bf16.msra.mxu0 0
    %553 = vmatpush.bf16.msra.mxu0 0
    %554 = vmatpush.bf16.msra.mxu0 %v545
    %555 = vmatmul.bf16.gmra.mxu0 %v542
    %v556 = vpop.f32.mrf.mxu0
    %v557 = vadd.f32 0.0, %v556
    %v558 = vpop.f32.mrf.mxu0
    %559 = vdwg.mxu0
    %560 = vrot.lane.b32.xlu0 %v441, 32
    %v561 = vpop.permute.xlu0 %560
    %562 = vrot.lane.b32.xlu0 %v446, 32
    %v563 = vpop.permute.xlu0 %562
    %v565 = vsel %vm386, %v561, 0
    %v568 = vsel %vm386, %v563, 0
    %570 = vmatpush.bf16.xpose.msra.mxu0 0
    %571 = vmatpush.bf16.xpose.msra.mxu0 0
    %572 = vmatpush.bf16.xpose.msra.mxu0 0
    %573 = vmatpush.bf16.xpose.msra.mxu0 0
    %574 = vmatpush.bf16.xpose.msra.mxu0 0
    %575 = vmatpush.bf16.xpose.msra.mxu0 0
    %576 = vmatpush.bf16.xpose.msra.mxu0 0
    %577 = vmatpush.bf16.xpose.msra.mxu0 %v568
    %578 = vmatmul.bf16.gmra.mxu0 %v565
    %v579 = vpop.f32.mrf.mxu0
    %v580 = vadd.f32 0.0, %v579
    %v581 = vpop.f32.mrf.mxu0
    %582 = vdwg.mxu0
    %v583 = vsel %vm406, %v580, -inf
    %584 = vmax.xlane.f32.xlu0 %v583
    %v585 = vpop.xlane.xlu0 %584
    %v586 = vsub.f32 %v580, %v585
    %v587 = vmul.f32 %v586, 1.442695
    %v588 = vpow.pop %v587
    %v589 = vsel %vm406, %v588, 0.0
    %590 = vadd.xlane.f32.xlu0 %v589
    %v591 = vpop.xlane.xlu0 %590
    %v592 = vrcp.pop %v591
    %v593 = vmul.f32 %v588, %v592
    %v594 = vpack.c.bf16 %v593, %v593
    %595 = vrot.lane.b32.xlu0 %v482, 32
    %v596 = vpop.permute.xlu0 %595
    %v598 = vsel %vm406, %v594, 0
    %v601 = vsel %vm422, %v596, 0
    %603 = vmatpush.bf16.msra.mxu0 0
    %604 = vmatpush.bf16.msra.mxu0 0
    %605 = vmatpush.bf16.msra.mxu0 0
    %606 = vmatpush.bf16.msra.mxu0 0
    %607 = vmatpush.bf16.msra.mxu0 0
    %608 = vmatpush.bf16.msra.mxu0 0
    %609 = vmatpush.bf16.msra.mxu0 0
    %610 = vmatpush.bf16.msra.mxu0 %v601
    %611 = vmatmul.bf16.gmra.mxu0 %v598
    %v612 = vpop.f32.mrf.mxu0
    %v613 = vadd.f32 0.0, %v612
    %v614 = vpop.f32.mrf.mxu0
    %615 = vdwg.mxu0
    %617 = vrot.lane.b32.xlu0 %v501, 32
    %v618 = vpop.permute.xlu0 %617
    %621 = vrot.lane.b32.xlu0 %v557, 64
    %v622 = vpop.permute.xlu0 %621
    %625 = vrot.lane.b32.xlu0 %v613, 96
    %v626 = vpop.permute.xlu0 %625
    %v628 = vsel %vm386, %v436, %v618
    %vm629 = vcmask 523264
    %v630 = vsel %vm629, %v628, %v622
    %vm631 = vcmask 785408
    %v632 = vsel %vm631, %v630, %v626
    %v634 = vsel %vm386, %v381, 0
    %v637 = vsel %vm386, %v383, 0
    %639 = vmatpush.bf16.xpose.msra.mxu0 0
    %640 = vmatpush.bf16.xpose.msra.mxu0 0
    %641 = vmatpush.bf16.xpose.msra.mxu0 0
    %642 = vmatpush.bf16.xpose.msra.mxu0 0
    %643 = vmatpush.bf16.xpose.msra.mxu0 0
    %644 = vmatpush.bf16.xpose.msra.mxu0 0
    %645 = vmatpush.bf16.xpose.msra.mxu0 0
    %646 = vmatpush.bf16.xpose.msra.mxu0 %v637
    %647 = vmatmul.bf16.gmra.mxu0 %v634
    %v648 = vpop.f32.mrf.mxu0
    %v649 = vadd.f32 0.0, %v648
    %v650 = vpop.f32.mrf.mxu0
    %651 = vdwg.mxu0
    %v652 = vsel %vm406, %v649, -inf
    %653 = vmax.xlane.f32.xlu0 %v652
    %v654 = vpop.xlane.xlu0 %653
    %v655 = vsub.f32 %v649, %v654
    %v656 = vmul.f32 %v655, 1.442695
    %v657 = vpow.pop %v656
    %v658 = vsel %vm406, %v657, 0.0
    %659 = vadd.xlane.f32.xlu0 %v658
    %v660 = vpop.xlane.xlu0 %659
    %v661 = vrcp.pop %v660
    %v662 = vmul.f32 %v657, %v661
    %v663 = vpack.c.bf16 %v662, %v662
    %v665 = vsel %vm406, %v663, 0
    %v668 = vsel %vm422, %v385, 0
    %670 = vmatpush.bf16.msra.mxu0 0
    %671 = vmatpush.bf16.msra.mxu0 0
    %672 = vmatpush.bf16.msra.mxu0 0
    %673 = vmatpush.bf16.msra.mxu0 0
    %674 = vmatpush.bf16.msra.mxu0 0
    %675 = vmatpush.bf16.msra.mxu0 0
    %676 = vmatpush.bf16.msra.mxu0 0
    %677 = vmatpush.bf16.msra.mxu0 %v668
    %678 = vmatmul.bf16.gmra.mxu0 %v665
    %v679 = vpop.f32.mrf.mxu0
    %v680 = vadd.f32 0.0, %v679
    %v681 = vpop.f32.mrf.mxu0
    %682 = vdwg.mxu0
    %v684 = vunpack.c.l.b16 %v381
    %v685 = vpack.c.b16 %v684, %v684
    %686 = vrot.lane.b32.xlu0 %v685, 96
    %v687 = vpop.permute.xlu0 %686
    %v689 = vunpack.c.l.b16 %v383
    %v690 = vpack.c.b16 %v689, %v689
    %691 = vrot.lane.b32.xlu0 %v690, 96
    %v692 = vpop.permute.xlu0 %691
    %v694 = vsel %vm386, %v687, 0
    %v697 = vsel %vm386, %v692, 0
    %699 = vmatpush.bf16.xpose.msra.mxu0 0
    %700 = vmatpush.bf16.xpose.msra.mxu0 0
    %701 = vmatpush.bf16.xpose.msra.mxu0 0
    %702 = vmatpush.bf16.xpose.msra.mxu0 0
    %703 = vmatpush.bf16.xpose.msra.mxu0 0
    %704 = vmatpush.bf16.xpose.msra.mxu0 0
    %705 = vmatpush.bf16.xpose.msra.mxu0 0
    %706 = vmatpush.bf16.xpose.msra.mxu0 %v697
    %707 = vmatmul.bf16.gmra.mxu0 %v694
    %v708 = vpop.f32.mrf.mxu0
    %v709 = vadd.f32 0.0, %v708
    %v710 = vpop.f32.mrf.mxu0
    %711 = vdwg.mxu0
    %v712 = vsel %vm406, %v709, -inf
    %713 = vmax.xlane.f32.xlu0 %v712
    %v714 = vpop.xlane.xlu0 %713
    %v715 = vsub.f32 %v709, %v714
    %v716 = vmul.f32 %v715, 1.442695
    %v717 = vpow.pop %v716
    %v718 = vsel %vm406, %v717, 0.0
    %719 = vadd.xlane.f32.xlu0 %v718
    %v720 = vpop.xlane.xlu0 %719
    %v721 = vrcp.pop %v720
    %v722 = vmul.f32 %v717, %v721
    %v723 = vpack.c.bf16 %v722, %v722
    %v725 = vunpack.c.l.b16 %v385
    %v726 = vpack.c.b16 %v725, %v725
    %727 = vrot.lane.b32.xlu0 %v726, 96
    %v728 = vpop.permute.xlu0 %727
    %v730 = vsel %vm406, %v723, 0
    %v733 = vsel %vm422, %v728, 0
    %735 = vmatpush.bf16.msra.mxu0 0
    %736 = vmatpush.bf16.msra.mxu0 0
    %737 = vmatpush.bf16.msra.mxu0 0
    %738 = vmatpush.bf16.msra.mxu0 0
    %739 = vmatpush.bf16.msra.mxu0 0
    %740 = vmatpush.bf16.msra.mxu0 0
    %741 = vmatpush.bf16.msra.mxu0 0
    %742 = vmatpush.bf16.msra.mxu0 %v733
    %743 = vmatmul.bf16.gmra.mxu0 %v730
    %v744 = vpop.f32.mrf.mxu0
    %v745 = vadd.f32 0.0, %v744
    %v746 = vpop.f32.mrf.mxu0
    %747 = vdwg.mxu0
    %748 = vrot.lane.b32.xlu0 %v685, 64
    %v749 = vpop.permute.xlu0 %748
    %750 = vrot.lane.b32.xlu0 %v690, 64
    %v751 = vpop.permute.xlu0 %750
    %v753 = vsel %vm386, %v749, 0
    %v756 = vsel %vm386, %v751, 0
    %758 = vmatpush.bf16.xpose.msra.mxu0 0
    %759 = vmatpush.bf16.xpose.msra.mxu0 0
    %760 = vmatpush.bf16.xpose.msra.mxu0 0
    %761 = vmatpush.bf16.xpose.msra.mxu0 0
    %762 = vmatpush.bf16.xpose.msra.mxu0 0
    %763 = vmatpush.bf16.xpose.msra.mxu0 0
    %764 = vmatpush.bf16.xpose.msra.mxu0 0
    %765 = vmatpush.bf16.xpose.msra.mxu0 %v756
    %766 = vmatmul.bf16.gmra.mxu0 %v753
    %v767 = vpop.f32.mrf.mxu0
    %v768 = vadd.f32 0.0, %v767
    %v769 = vpop.f32.mrf.mxu0
    %770 = vdwg.mxu0
    %v771 = vsel %vm406, %v768, -inf
    %772 = vmax.xlane.f32.xlu0 %v771
    %v773 = vpop.xlane.xlu0 %772
    %v774 = vsub.f32 %v768, %v773
    %v775 = vmul.f32 %v774, 1.442695
    %v776 = vpow.pop %v775
    %v777 = vsel %vm406, %v776, 0.0
    %778 = vadd.xlane.f32.xlu0 %v777
    %v779 = vpop.xlane.xlu0 %778
    %v780 = vrcp.pop %v779
    %v781 = vmul.f32 %v776, %v780
    %v782 = vpack.c.bf16 %v781, %v781
    %783 = vrot.lane.b32.xlu0 %v726, 64
    %v784 = vpop.permute.xlu0 %783
    %v786 = vsel %vm406, %v782, 0
    %v789 = vsel %vm422, %v784, 0
    %791 = vmatpush.bf16.msra.mxu0 0
    %792 = vmatpush.bf16.msra.mxu0 0
    %793 = vmatpush.bf16.msra.mxu0 0
    %794 = vmatpush.bf16.msra.mxu0 0
    %795 = vmatpush.bf16.msra.mxu0 0
    %796 = vmatpush.bf16.msra.mxu0 0
    %797 = vmatpush.bf16.msra.mxu0 0
    %798 = vmatpush.bf16.msra.mxu0 %v789
    %799 = vmatmul.bf16.gmra.mxu0 %v786
    %v800 = vpop.f32.mrf.mxu0
    %v801 = vadd.f32 0.0, %v800
    %v802 = vpop.f32.mrf.mxu0
    %803 = vdwg.mxu0
    %804 = vrot.lane.b32.xlu0 %v685, 32
    %v805 = vpop.permute.xlu0 %804
    %806 = vrot.lane.b32.xlu0 %v690, 32
    %v807 = vpop.permute.xlu0 %806
    %v809 = vsel %vm386, %v805, 0
    %v812 = vsel %vm386, %v807, 0
    %814 = vmatpush.bf16.xpose.msra.mxu0 0
    %815 = vmatpush.bf16.xpose.msra.mxu0 0
    %816 = vmatpush.bf16.xpose.msra.mxu0 0
    %817 = vmatpush.bf16.xpose.msra.mxu0 0
    %818 = vmatpush.bf16.xpose.msra.mxu0 0
    %819 = vmatpush.bf16.xpose.msra.mxu0 0
    %820 = vmatpush.bf16.xpose.msra.mxu0 0
    %821 = vmatpush.bf16.xpose.msra.mxu0 %v812
    %822 = vmatmul.bf16.gmra.mxu0 %v809
    %v823 = vpop.f32.mrf.mxu0
    %v824 = vadd.f32 0.0, %v823
    %v825 = vpop.f32.mrf.mxu0
    %826 = vdwg.mxu0
    %v827 = vsel %vm406, %v824, -inf
    %828 = vmax.xlane.f32.xlu0 %v827
    %v829 = vpop.xlane.xlu0 %828
    %v830 = vsub.f32 %v824, %v829
    %v831 = vmul.f32 %v830, 1.442695
    %v832 = vpow.pop %v831
    %v833 = vsel %vm406, %v832, 0.0
    %834 = vadd.xlane.f32.xlu0 %v833
    %v835 = vpop.xlane.xlu0 %834
    %v836 = vrcp.pop %v835
    %v837 = vmul.f32 %v832, %v836
    %v838 = vpack.c.bf16 %v837, %v837
    %839 = vrot.lane.b32.xlu0 %v726, 32
    %v840 = vpop.permute.xlu0 %839
    %v842 = vsel %vm406, %v838, 0
    %v845 = vsel %vm422, %v840, 0
    %847 = vmatpush.bf16.msra.mxu0 0
    %848 = vmatpush.bf16.msra.mxu0 0
    %849 = vmatpush.bf16.msra.mxu0 0
    %850 = vmatpush.bf16.msra.mxu0 0
    %851 = vmatpush.bf16.msra.mxu0 0
    %852 = vmatpush.bf16.msra.mxu0 0
    %853 = vmatpush.bf16.msra.mxu0 0
    %854 = vmatpush.bf16.msra.mxu0 %v845
    %855 = vmatmul.bf16.gmra.mxu0 %v842
    %v856 = vpop.f32.mrf.mxu0
    %v857 = vadd.f32 0.0, %v856
    %v858 = vpop.f32.mrf.mxu0
    %859 = vdwg.mxu0
    %861 = vrot.lane.b32.xlu0 %v745, 32
    %v862 = vpop.permute.xlu0 %861
    %865 = vrot.lane.b32.xlu0 %v801, 64
    %v866 = vpop.permute.xlu0 %865
    %869 = vrot.lane.b32.xlu0 %v857, 96
    %v870 = vpop.permute.xlu0 %869
    %v872 = vsel %vm386, %v680, %v862
    %v873 = vsel %vm629, %v872, %v866
    %v874 = vsel %vm631, %v873, %v870
    %v875 = vpack.c.bf16 %v874, %v632
    %v876 = vld [vmem:[#allocation13] sm:$0xf]
    %v877 = vld [vmem:[#allocation13 + $0x4] sm:$0xf]
    %v878 = vld [vmem:[#allocation13 + $0x8] sm:$0xf]
    %v879 = vld [vmem:[#allocation13 + $0xc] sm:$0xf]
    %v880 = vld [vmem:[#allocation13 + $0x10] sm:$0xf]
    %v881 = vld [vmem:[#allocation13 + $0x14] sm:$0xf]
    %v882 = vld [vmem:[#allocation13 + $0x18] sm:$0xf]
    %v883 = vld [vmem:[#allocation13 + $0x1c] sm:$0xf]
    %v884 = vld [vmem:[#allocation13 + $0x20] sm:$0xf]
    %v885 = vld [vmem:[#allocation13 + $0x24] sm:$0xf]
    %v886 = vld [vmem:[#allocation13 + $0x28] sm:$0xf]
    %v887 = vld [vmem:[#allocation13 + $0x2c] sm:$0xf]
    %v888 = vld [vmem:[#allocation13 + $0x30] sm:$0xf]
    %v889 = vld [vmem:[#allocation13 + $0x34] sm:$0xf]
    %v890 = vld [vmem:[#allocation13 + $0x38] sm:$0xf]
    %v891 = vld [vmem:[#allocation13 + $0x3c] sm:$0xf]
    %v908 = vunpack.c.l.b16 %v876
    %v909 = vunpack.c.l.b16 %v877
    %v910 = vunpack.c.l.b16 %v878
    %v911 = vunpack.c.l.b16 %v879
    %v912 = vunpack.c.l.b16 %v880
    %v913 = vunpack.c.l.b16 %v881
    %v914 = vunpack.c.l.b16 %v882
    %v915 = vunpack.c.l.b16 %v883
    %v916 = vunpack.c.l.b16 %v884
    %v917 = vunpack.c.l.b16 %v885
    %v918 = vunpack.c.l.b16 %v886
    %v919 = vunpack.c.l.b16 %v887
    %v920 = vunpack.c.l.b16 %v888
    %v921 = vunpack.c.l.b16 %v889
    %v922 = vunpack.c.l.b16 %v890
    %v923 = vunpack.c.l.b16 %v891
    %v924 = vpack.c.b16 %v909, %v908
    %v925 = vpack.c.b16 %v911, %v910
    %v926 = vpack.c.b16 %v913, %v912
    %v927 = vpack.c.b16 %v915, %v914
    %v928 = vpack.c.b16 %v917, %v916
    %v929 = vpack.c.b16 %v919, %v918
    %v930 = vpack.c.b16 %v921, %v920
    %v931 = vpack.c.b16 %v923, %v922
    %940 = vmatpush.bf16.msra.mxu0 %v931
    %941 = vmatpush.bf16.msra.mxu0 %v930
    %942 = vmatpush.bf16.msra.mxu0 %v929
    %943 = vmatpush.bf16.msra.mxu0 %v928
    %944 = vmatpush.bf16.msra.mxu0 %v927
    %945 = vmatpush.bf16.msra.mxu0 %v926
    %946 = vmatpush.bf16.msra.mxu0 %v925
    %947 = vmatpush.bf16.msra.mxu0 %v924
    %948 = vmatmul.bf16.gmra.mxu0 %v875
    %v949 = vpop.f32.mrf.mxu0
    %v950 = vadd.f32 %v137, %v949
    %v951 = vpop.f32.mrf.mxu0
    %v952 = vadd.f32 %v138, %v951
    %953 = vdwg.mxu0
    %954 = vadd.xlane.f32.xlu0 %v950
    %v955 = vpop.xlane.xlu0 %954
    %956 = vadd.xlane.f32.xlu0 %v952
    %v957 = vpop.xlane.xlu0 %956
    %v958 = vrcp.pop 128.0
    %v959 = vmul.f32 128.0, %v958
    %v960 = vsub.f32 1.0, %v959
    %v961 = vmul.f32 %v958, %v960
    %v962 = vadd.f32 %v958, %v961
    %vm963 = vweird.f32 %v958
    %v964 = vsel %vm963, %v958, %v962
    %v965 = vmul.f32 %v955, %v964
    %v966 = vmul.f32 %v957, %v964
    %v967 = vsub.f32 %v950, %v965
    %v968 = vsub.f32 %v952, %v966
    %v969 = vmul.f32 %v967, %v967
    %v970 = vmul.f32 %v968, %v968
    %971 = vadd.xlane.f32.xlu0 %v969
    %v972 = vpop.xlane.xlu0 %971
    %973 = vadd.xlane.f32.xlu0 %v970
    %v974 = vpop.xlane.xlu0 %973
    %v975 = vmul.f32 %v972, %v964
    %v976 = vmul.f32 %v974, %v964
    %v977 = vadd.f32 %v975, 1e-05
    %v978 = vadd.f32 %v976, 1e-05
    %v979 = vrsqrt.pop %v977
    %v980 = vmul.f32 %v979, %v977
    %v981 = vmul.f32 %v980, %v979
    %v982 = vmul.f32 0.5, %v981
    %v983 = vsub.f32 1.5, %v982
    %v984 = vmul.f32 %v979, %v983
    %vm985 = vweird.f32 %v977
    %vm986 = vweird.f32 %v979
    %vm987 = vmor %vm985, %vm986
    %v988 = vsel %vm987, %v979, %v984
    %v989 = vrsqrt.pop %v978
    %v990 = vmul.f32 %v989, %v978
    %v991 = vmul.f32 %v990, %v989
    %v992 = vmul.f32 0.5, %v991
    %v993 = vsub.f32 1.5, %v992
    %v994 = vmul.f32 %v989, %v993
    %vm995 = vweird.f32 %v978
    %vm996 = vweird.f32 %v989
    %vm997 = vmor %vm995, %vm996
    %v998 = vsel %vm997, %v989, %v994
    %v999 = vmul.f32 %v967, %v988
    %v1000 = vmul.f32 %v968, %v998
    %1001 = vst [vmem:[#allocation14] sm:$0xff] %v999
    %1002 = vst [vmem:[#allocation14 + $0x8] sm:$0xff] %v1000
    // Predicated region
    $region58: #{tpu_custom_call.1} parent=1 // pred_check
      _
    $region59: #{tpu_custom_call.1} parent=1 // pred_check_branch
      %1004 = sbr.rel (0) target = $region61
    $region60: #{tpu_custom_call.1} parent=1 // pred_region
      %1006 = vsyncadd [#allocation4], 0
      %s1007 = sshll.u32 [#allocation14], 4
      %s1008 = int_to_ptr.vmem [resolvable:$true] %s1007
      %s1009 = sshll.u32 %s7, 4
      %s1010 = int_to_ptr.hbm [resolvable:$true] %s1009
      %1015 = dma.vmem_to_hbm [thread:$0]  %s1008, 256, %s1010, [#allocation4], 128, 128, 8
    $region61: #{tpu_custom_call.1} parent=1 // pred_fallthru
      _
    // Predicated region
    $region62: #{tpu_custom_call.1} parent=1 // pred_check
      _
    $region63: #{tpu_custom_call.1} parent=1 // pred_check_branch
      %1017 = sbr.rel (0) target = $region65
    $region64: #{tpu_custom_call.1} parent=1 // pred_region
      %1019 = dma.done [#allocation4], 256
    $region65: #{tpu_custom_call.1} parent=1 // pred_fallthru
      _
    %1020 = vsyncpa [#allocation3], 1
    %1021 = vsyncpa [#allocation6], 1
    %1022 = vsyncpa [#allocation9], 1
    %1023 = vsyncpa [#allocation12], 1
    %1024 = vsyncpa [#allocation4], 1

</llo_original>
